<compile_context>
chip_gen: v7x
topology: tpu7x:2x2x1
jax: 0.10.0
libtpu: 0.0.40
codegen_flags: <defaults>
</compile_context>

<pallas_src>
import functools

import jax
import jax.numpy as jnp
from jax.experimental import pallas as pl
from jax.experimental.pallas import tpu as pltpu

EPS = 1e-3  # LayerNormalization eps in the reference module


def _round_up(x, m):
    return (x + m - 1) // m * m


def _vmem_capacity_bytes():
    try:
        return int(pltpu.get_tpu_info().vmem_capacity_bytes)
    except Exception:
        return 64 * 1024 * 1024  # conservative (v7x per-core VMEM)


# ----------------------------------------------------------------------------
# Fused feed-forward kernel.
#   multi_k=False: grid (row_tiles,)        -- weights fully VMEM resident.
#   multi_k=True : grid (row_tiles, nk)     -- d_inner reduction axis last,
#                  f32 accumulator scratch, epilogue at the final inner step.
# Epilogue: conv2 bias + residual + LayerNormalization (unbiased std, eps
# added to sigma -- matches torch.std default and the reference module).
# ----------------------------------------------------------------------------
def _ffn_kernel(x_ref, w1_ref, b1_ref, w2_ref, b2_ref, g_ref, be_ref,
                o_ref, *scratch, d_valid, multi_k, apply_ln):
    if multi_k:
        acc_ref, xbf_ref = scratch
        k = pl.program_id(1)
        nk = pl.num_programs(1)

        # Hoist the x -> bf16 cast out of the inner (k) loop.
        @pl.when(k == 0)
        def _cast_x():
            xbf_ref[...] = x_ref[...].astype(jnp.bfloat16)

        x_bf = xbf_ref[...]
    else:
        x_bf = x_ref[...].astype(jnp.bfloat16)

    # Matmul 1: (TM, D) @ (D, TK) -> f32, bias + ReLU in f32 on the VPU.
    h = jnp.dot(x_bf, w1_ref[...], preferred_element_type=jnp.float32)
    h = jnp.maximum(h + b1_ref[...], 0.0)
    # Matmul 2: (TM, TK) @ (TK, D) -> f32 partial contribution.
    part = jnp.dot(h.astype(jnp.bfloat16), w2_ref[...],
                   preferred_element_type=jnp.float32)

    def _epilogue(z_pre):
        # conv2 bias + residual (dropout == identity in eval mode).
        z = z_pre + b2_ref[...] + x_ref[...].astype(jnp.float32)
        if apply_ln:
            d_pad = z.shape[-1]
            mu = jnp.sum(z, axis=-1, keepdims=True) * (1.0 / d_valid)
            zc = z - mu
            if d_valid != d_pad:
                # Padded feature lanes hold exact zeros in z; mask them out of
                # the variance (mean already correct since pads contribute 0).
                lane = jax.lax.broadcasted_iota(jnp.int32, z.shape, 1)
                zc = jnp.where(lane < d_valid, zc, 0.0)
            var = jnp.sum(zc * zc, axis=-1, keepdims=True) * (1.0 / (d_valid - 1))
            inv = pl.reciprocal(jnp.sqrt(var) + EPS, approx=True)  # EUP slot
            z = zc * inv * g_ref[...] + be_ref[...]
        o_ref[...] = z.astype(o_ref.dtype)

    if multi_k:
        @pl.when(k == 0)
        def _first():
            acc_ref[...] = part

        @pl.when(k > 0)
        def _accum():
            acc_ref[...] += part

        @pl.when(k == nk - 1)
        def _final():
            _epilogue(acc_ref[...])
    else:
        _epilogue(part)


# ----------------------------------------------------------------------------
# One-time parameter preparation (outside jit): pad d_hid to a 128 multiple,
# cast the Conv1d(k=1) weights (already stored transposed for x @ W) to bf16.
# ----------------------------------------------------------------------------
def prepare_params(params):
    w1, b1 = params["w1"], params["b1"]          # (D, Dinner), (1, Dinner)
    w2, b2 = params["w2"], params["b2"]          # (Dinner, D), (1, D)
    gamma, beta = params["gamma"], params["beta"]
    d_hid = w1.shape[0]
    d_pad = _round_up(d_hid, 128)
    if d_pad != d_hid:
        pad = d_pad - d_hid
        w1 = jnp.pad(w1, ((0, pad), (0, 0)))
        w2 = jnp.pad(w2, ((0, 0), (0, pad)))
        b2 = jnp.pad(b2, ((0, 0), (0, pad)))
        gamma = jnp.pad(gamma, ((0, 0), (0, pad)))
        beta = jnp.pad(beta, ((0, 0), (0, pad)))
    return dict(
        w1=w1.astype(jnp.bfloat16), b1=b1.astype(jnp.float32),
        w2=w2.astype(jnp.bfloat16), b2=b2.astype(jnp.float32),
        gamma=gamma.astype(jnp.float32), beta=beta.astype(jnp.float32),
    )


def positionwise_feed_forward(x, prep, *, block_rows=512, block_inner=512,
                              force_inner_tiling=False):
    """x: (B, L, d_hid). prep: output of prepare_params. Eval-mode dropout."""
    B, L, D0 = x.shape
    D = prep["w1"].shape[0]        # padded d_model (multiple of 128)
    Dinner = prep["w1"].shape[1]
    apply_ln = (L != 1)            # LayerNormalization skip branch when L == 1

    # Flatten (B, L, D0) -> rows, pad feature dim to D.
    N = B * L
    xf = x.reshape(N, D0)
    if D != D0:
        xf = jnp.pad(xf, ((0, 0), (0, D - D0)))

    # --- VMEM budget (generation aware) -------------------------------------
    vmem_cap = _vmem_capacity_bytes()
    ceiling = min(vmem_cap - 8 * 1024 * 1024, 112 * 1024 * 1024)
    budget = int(ceiling * 0.9)
    xb = x.dtype.itemsize
    wb = 2  # bf16 weights

    def est_vmem(tm_, tk_, multi):
        b = 2 * tm_ * D * xb * 2              # x + out row tiles, double-buffered
        b += 2 * (D * tk_ + tk_ * D) * wb     # W1 + W2 tiles, double-buffered
        b += 2 * (tk_ * 4 + 3 * D * 4)        # b1 + (b2, gamma, beta)
        b += tm_ * tk_ * (4 + wb)             # hidden act (f32) + bf16 copy
        if multi:
            b += tm_ * D * 4                  # f32 accumulator scratch
            b += tm_ * D * wb                 # resident bf16 x tile
        return b

    # --- row tiling ----------------------------------------------------------
    tm = min(block_rows, _round_up(N, 8))
    if tm >= N and N > 8:
        # ensure >= 2 row tiles so the parallel axis can shard across 2 TCs (v7x)
        tm = _round_up((N + 1) // 2, 8)

    # --- d_inner tiling: prefer fully resident weights when they fit ---------
    tk = Dinner
    if force_inner_tiling or est_vmem(tm, Dinner, False) > budget:
        limit = min(block_inner, Dinner - 1 if force_inner_tiling else Dinner)
        cand = [d for d in range(128, limit + 1, 128) if Dinner % d == 0]
        if cand:
            fitting = [d for d in cand if est_vmem(tm, d, True) <= budget]
            tk = max(fitting) if fitting else min(cand)

    # Last resort: shrink the row tile if the working set is still too large.
    while est_vmem(tm, tk, tk < Dinner) > budget and tm > 8:
        tm = max(8, _round_up(tm // 2, 8))

    n_pad = _round_up(N, tm)
    if n_pad != N:
        xf = jnp.pad(xf, ((0, n_pad - N), (0, 0)))

    multi_k = tk < Dinner
    nk = Dinner // tk
    est = est_vmem(tm, tk, multi_k)
    vmem_limit = int(min(ceiling, max(4 * est, 32 * 1024 * 1024)))

    kernel = functools.partial(_ffn_kernel, d_valid=D0, multi_k=multi_k,
                               apply_ln=apply_ln)

    if multi_k:
        grid = (n_pad // tm, nk)
        in_specs = [
            pl.BlockSpec((tm, D), lambda i, k: (i, 0)),   # x rows (resident over k)
            pl.BlockSpec((D, tk), lambda i, k: (0, k)),   # W1 inner tile (bf16)
            pl.BlockSpec((1, tk), lambda i, k: (0, k)),   # b1 inner tile
            pl.BlockSpec((tk, D), lambda i, k: (k, 0)),   # W2 inner tile (bf16)
            pl.BlockSpec((1, D), lambda i, k: (0, 0)),    # b2
            pl.BlockSpec((1, D), lambda i, k: (0, 0)),    # gamma
            pl.BlockSpec((1, D), lambda i, k: (0, 0)),    # beta
        ]
        out_specs = pl.BlockSpec((tm, D), lambda i, k: (i, 0))
        scratch = [pltpu.VMEM((tm, D), jnp.float32),      # f32 accumulator
                   pltpu.VMEM((tm, D), jnp.bfloat16)]     # hoisted bf16 x tile
        dims = ("parallel", "arbitrary")
    else:
        grid = (n_pad // tm,)
        in_specs = [
            pl.BlockSpec((tm, D), lambda i: (i, 0)),      # x rows
            pl.BlockSpec((D, Dinner), lambda i: (0, 0)),  # W1 (VMEM resident)
            pl.BlockSpec((1, Dinner), lambda i: (0, 0)),  # b1
            pl.BlockSpec((Dinner, D), lambda i: (0, 0)),  # W2 (VMEM resident)
            pl.BlockSpec((1, D), lambda i: (0, 0)),       # b2
            pl.BlockSpec((1, D), lambda i: (0, 0)),       # gamma
            pl.BlockSpec((1, D), lambda i: (0, 0)),       # beta
        ]
        out_specs = pl.BlockSpec((tm, D), lambda i: (i, 0))
        scratch = []
        dims = ("parallel",)

    out = pl.pallas_call(
        kernel,
        out_shape=jax.ShapeDtypeStruct((n_pad, D), x.dtype),
        grid=grid,
        in_specs=in_specs,
        out_specs=out_specs,
        scratch_shapes=scratch,
        compiler_params=pltpu.CompilerParams(
            dimension_semantics=dims,
            vmem_limit_bytes=vmem_limit),
    )(xf, prep["w1"], prep["b1"], prep["w2"], prep["b2"],
      prep["gamma"], prep["beta"])

    return out[:N, :D0].reshape(B, L, D0)


# ----------------------------------------------------------------------------
# Parameters (Conv1d(k=1) weights stored already transposed for x @ W)
# ----------------------------------------------------------------------------
def init_params(key, d_hid, d_inner):
    k1, k2, k3, k4 = jax.random.split(key, 4)

    def xav(k, shape):
        fan_in, fan_out = shape
        std = jnp.sqrt(2.0 / (fan_in + fan_out))
        return jax.random.normal(k, shape, jnp.float32) * std

    return dict(
        w1=xav(k1, (d_hid, d_inner)),
        b1=jax.random.normal(k2, (1, d_inner), jnp.float32) * 0.05,
        w2=xav(k3, (d_inner, d_hid)),
        b2=jax.random.normal(k4, (1, d_hid), jnp.float32) * 0.05,
        gamma=jnp.ones((1, d_hid), jnp.float32),
        beta=jnp.zeros((1, d_hid), jnp.float32),
    )


# ----------------------------------------------------------------------------
# Pure-JAX (f32) reference of the PyTorch module, for sanity checking
# ----------------------------------------------------------------------------
def positionwise_feed_forward_ref(x, params):
    w1, b1 = params["w1"], params["b1"]
    w2, b2 = params["w2"], params["b2"]
    gamma, beta = params["gamma"], params["beta"]
    h = jnp.maximum(x @ w1 + b1.reshape(1, 1, -1), 0.0)
    y = h @ w2 + b2.reshape(1, 1, -1)
    z = y + x                                     # dropout == identity (eval)
    if x.shape[1] == 1:                           # LayerNormalization skip branch
        return z
    D = z.shape[-1]
    mu = z.mean(-1, keepdims=True)
    sigma = jnp.sqrt(((z - mu) ** 2).sum(-1, keepdims=True) / (D - 1))
    return (z - mu) / (sigma + EPS) * gamma.reshape(1, 1, D) + beta.reshape(1, 1, D)


# ----------------------------------------------------------------------------
if __name__ == "__main__":
    key = jax.random.PRNGKey(0)
    ks = jax.random.split(key, 8)

    def check(B, L, d_hid, d_inner, kp, kx, **kw):
        params = init_params(kp, d_hid, d_inner)
        prep = prepare_params(params)                 # one-time: pad + bf16 cast
        x = jax.random.normal(kx, (B, L, d_hid), jnp.float32)
        run = jax.jit(functools.partial(positionwise_feed_forward, **kw))
        out = jax.block_until_ready(run(x, prep))
        ref = positionwise_feed_forward_ref(x, params)
        assert out.shape == (B, L, d_hid)
        err = float(jnp.max(jnp.abs(out - ref)))
        assert jnp.allclose(out, ref, atol=5e-2, rtol=5e-2), f"mismatch, max err {err}"
        return out

    # Main case: B=2, L=8, d_hid=32, d_inner=64 (resident weights, 1-D grid).
    check(2, 8, 32, 64, ks[0], ks[1])
    # Ragged row count (padding) + forced d_inner reduction tiling (2 inner
    # steps, f32 accumulator + hoisted bf16 x-cast path).
    check(2, 5, 32, 256, ks[2], ks[3], block_inner=128, force_inner_tiling=True)
    # L == 1: LayerNormalization is skipped (matches the PyTorch branch).
    check(2, 1, 32, 64, ks[4], ks[5])

    print("KERNEL_OK")
</pallas_src>

<mosaic_0001>
module attributes {stable_mosaic.version = 11 : i64} {
  func.func @_ffn_kernel(%arg0: i32, %arg1: memref<8x128xf32, #tpu.memory_space<vmem>>, %arg2: memref<128x64xbf16, #tpu.memory_space<vmem>>, %arg3: memref<1x64xf32, #tpu.memory_space<vmem>>, %arg4: memref<64x128xbf16, #tpu.memory_space<vmem>>, %arg5: memref<1x128xf32, #tpu.memory_space<vmem>>, %arg6: memref<1x128xf32, #tpu.memory_space<vmem>>, %arg7: memref<1x128xf32, #tpu.memory_space<vmem>>, %arg8: memref<8x128xf32, #tpu.memory_space<vmem>>) attributes {dimension_semantics = [#tpu.dimension_semantics<parallel>], iteration_bounds = array<i64: 2>, scalar_prefetch = 0 : i64, scratch_operands = 0 : i64, tpu.core_type = #tpu.core_type<tc>, window_params = [{transform_indices = @transform_0, window_bounds = array<i64: 8, 128>}, {pipeline_mode = #tpu.pipeline_mode<synchronous>, transform_indices = @transform_1, window_bounds = array<i64: 128, 64>}, {pipeline_mode = #tpu.pipeline_mode<synchronous>, transform_indices = @transform_2, window_bounds = array<i64: 1, 64>}, {pipeline_mode = #tpu.pipeline_mode<synchronous>, transform_indices = @transform_3, window_bounds = array<i64: 64, 128>}, {pipeline_mode = #tpu.pipeline_mode<synchronous>, transform_indices = @transform_4, window_bounds = array<i64: 1, 128>}, {pipeline_mode = #tpu.pipeline_mode<synchronous>, transform_indices = @transform_5, window_bounds = array<i64: 1, 128>}, {pipeline_mode = #tpu.pipeline_mode<synchronous>, transform_indices = @transform_6, window_bounds = array<i64: 1, 128>}, {transform_indices = @transform_7, window_bounds = array<i64: 8, 128>}]} {
    %c0 = arith.constant 0 : index
    %c0_0 = arith.constant 0 : index
    %0 = vector.load %arg1[%c0, %c0_0] : memref<8x128xf32, #tpu.memory_space<vmem>>, vector<8x128xf32>
    %1 = arith.truncf %0 : vector<8x128xf32> to vector<8x128xbf16>
    %c0_1 = arith.constant 0 : index
    %c0_2 = arith.constant 0 : index
    %2 = vector.load %arg2[%c0_1, %c0_2] : memref<128x64xbf16, #tpu.memory_space<vmem>>, vector<128x64xbf16>
    %cst = arith.constant dense<0.000000e+00> : vector<8x64xf32>
    %3 = tpu.matmul %1, %2, %cst {dimension_numbers = #tpu.dot_dimension_numbers<[1], [0], [0], [1], [0, 0, 1, 1], [], []>} : vector<8x128xbf16>, vector<128x64xbf16>, vector<8x64xf32> -> vector<8x64xf32>
    %c0_3 = arith.constant 0 : index
    %c0_4 = arith.constant 0 : index
    %4 = vector.load %arg3[%c0_3, %c0_4] : memref<1x64xf32, #tpu.memory_space<vmem>>, vector<1x64xf32>
    %5 = vector.broadcast %4 : vector<1x64xf32> to vector<8x64xf32>
    %6 = arith.addf %3, %5 : vector<8x64xf32>
    %cst_5 = arith.constant 0.000000e+00 : f32
    %7 = vector.broadcast %cst_5 : f32 to vector<8x64xf32>
    %8 = arith.maximumf %6, %7 : vector<8x64xf32>
    %9 = arith.truncf %8 : vector<8x64xf32> to vector<8x64xbf16>
    %c0_6 = arith.constant 0 : index
    %c0_7 = arith.constant 0 : index
    %10 = vector.load %arg4[%c0_6, %c0_7] : memref<64x128xbf16, #tpu.memory_space<vmem>>, vector<64x128xbf16>
    %cst_8 = arith.constant dense<0.000000e+00> : vector<8x128xf32>
    %11 = tpu.matmul %9, %10, %cst_8 {dimension_numbers = #tpu.dot_dimension_numbers<[1], [0], [0], [1], [0, 0, 1, 1], [], []>} : vector<8x64xbf16>, vector<64x128xbf16>, vector<8x128xf32> -> vector<8x128xf32>
    %c0_9 = arith.constant 0 : index
    %c0_10 = arith.constant 0 : index
    %12 = vector.load %arg5[%c0_9, %c0_10] : memref<1x128xf32, #tpu.memory_space<vmem>>, vector<1x128xf32>
    %13 = vector.broadcast %12 : vector<1x128xf32> to vector<8x128xf32>
    %14 = arith.addf %11, %13 : vector<8x128xf32>
    %c0_11 = arith.constant 0 : index
    %c0_12 = arith.constant 0 : index
    %15 = vector.load %arg1[%c0_11, %c0_12] : memref<8x128xf32, #tpu.memory_space<vmem>>, vector<8x128xf32>
    %16 = arith.addf %14, %15 : vector<8x128xf32>
    %cst_13 = arith.constant dense<0.000000e+00> : vector<8xf32>
    %17 = vector.multi_reduction <add>, %16, %cst_13 [1] : vector<8x128xf32> to vector<8xf32>
    %18 = vector.shape_cast %17 : vector<8xf32> to vector<8x1xf32>
    %cst_14 = arith.constant 3.125000e-02 : f32
    %19 = vector.broadcast %cst_14 : f32 to vector<8x1xf32>
    %20 = arith.mulf %18, %19 : vector<8x1xf32>
    %21 = vector.broadcast %20 : vector<8x1xf32> to vector<8x128xf32>
    %22 = arith.subf %16, %21 : vector<8x128xf32>
    %23 = tpu.iota {dimensions = array<i32: 1>} : vector<8x128xi32>
    %c32_i32 = arith.constant 32 : i32
    %24 = vector.broadcast %c32_i32 : i32 to vector<8x128xi32>
    %25 = arith.cmpi slt, %23, %24 : vector<8x128xi32>
    %cst_15 = arith.constant 0.000000e+00 : f32
    %26 = vector.broadcast %cst_15 : f32 to vector<8x128xf32>
    %27 = arith.select %25, %22, %26 : vector<8x128xi1>, vector<8x128xf32>
    %28 = arith.mulf %27, %27 : vector<8x128xf32>
    %cst_16 = arith.constant dense<0.000000e+00> : vector<8xf32>
    %29 = vector.multi_reduction <add>, %28, %cst_16 [1] : vector<8x128xf32> to vector<8xf32>
    %30 = vector.shape_cast %29 : vector<8xf32> to vector<8x1xf32>
    %cst_17 = arith.constant 0.0322580636 : f32
    %31 = vector.broadcast %cst_17 : f32 to vector<8x1xf32>
    %32 = arith.mulf %30, %31 : vector<8x1xf32>
    %33 = math.sqrt %32 : vector<8x1xf32>
    %cst_18 = arith.constant 1.000000e-03 : f32
    %34 = vector.broadcast %cst_18 : f32 to vector<8x1xf32>
    %35 = arith.addf %33, %34 : vector<8x1xf32>
    %36 = tpu.reciprocal %35 {approx = true} : vector<8x1xf32> -> vector<8x1xf32>
    %37 = vector.broadcast %36 : vector<8x1xf32> to vector<8x128xf32>
    %38 = arith.mulf %27, %37 : vector<8x128xf32>
    %c0_19 = arith.constant 0 : index
    %c0_20 = arith.constant 0 : index
    %39 = vector.load %arg6[%c0_19, %c0_20] : memref<1x128xf32, #tpu.memory_space<vmem>>, vector<1x128xf32>
    %40 = vector.broadcast %39 : vector<1x128xf32> to vector<8x128xf32>
    %41 = arith.mulf %38, %40 : vector<8x128xf32>
    %c0_21 = arith.constant 0 : index
    %c0_22 = arith.constant 0 : index
    %42 = vector.load %arg7[%c0_21, %c0_22] : memref<1x128xf32, #tpu.memory_space<vmem>>, vector<1x128xf32>
    %43 = vector.broadcast %42 : vector<1x128xf32> to vector<8x128xf32>
    %44 = arith.addf %41, %43 : vector<8x128xf32>
    %c0_23 = arith.constant 0 : index
    %c0_24 = arith.constant 0 : index
    %45 = vector.load %arg8[%c0_23, %c0_24] : memref<8x128xf32, #tpu.memory_space<vmem>>, vector<8x128xf32>
    tpu.vector_store %arg8[%c0_23, %c0_24], %44 {strides = array<i32>} : memref<8x128xf32, #tpu.memory_space<vmem>>, vector<8x128xf32>,
    return
  }
  func.func @transform_0(%arg0: i32) -> (i32, i32) {
    %c0_i32 = arith.constant 0 : i32
    %c0_i32_0 = arith.constant 0 : i32
    return %arg0, %c0_i32 : i32, i32
  }
  func.func @transform_1(%arg0: i32) -> (i32, i32) {
    %c0_i32 = arith.constant 0 : i32
    %c0_i32_0 = arith.constant 0 : i32
    %c0_i32_1 = arith.constant 0 : i32
    return %c0_i32, %c0_i32_0 : i32, i32
  }
  func.func @transform_2(%arg0: i32) -> (i32, i32) {
    %c0_i32 = arith.constant 0 : i32
    %c0_i32_0 = arith.constant 0 : i32
    %c0_i32_1 = arith.constant 0 : i32
    return %c0_i32, %c0_i32_0 : i32, i32
  }
  func.func @transform_3(%arg0: i32) -> (i32, i32) {
    %c0_i32 = arith.constant 0 : i32
    %c0_i32_0 = arith.constant 0 : i32
    %c0_i32_1 = arith.constant 0 : i32
    return %c0_i32, %c0_i32_0 : i32, i32
  }
  func.func @transform_4(%arg0: i32) -> (i32, i32) {
    %c0_i32 = arith.constant 0 : i32
    %c0_i32_0 = arith.constant 0 : i32
    %c0_i32_1 = arith.constant 0 : i32
    return %c0_i32, %c0_i32_0 : i32, i32
  }
  func.func @transform_5(%arg0: i32) -> (i32, i32) {
    %c0_i32 = arith.constant 0 : i32
    %c0_i32_0 = arith.constant 0 : i32
    %c0_i32_1 = arith.constant 0 : i32
    return %c0_i32, %c0_i32_0 : i32, i32
  }
  func.func @transform_6(%arg0: i32) -> (i32, i32) {
    %c0_i32 = arith.constant 0 : i32
    %c0_i32_0 = arith.constant 0 : i32
    %c0_i32_1 = arith.constant 0 : i32
    return %c0_i32, %c0_i32_0 : i32, i32
  }
  func.func @transform_7(%arg0: i32) -> (i32, i32) {
    %c0_i32 = arith.constant 0 : i32
    %c0_i32_0 = arith.constant 0 : i32
    return %arg0, %c0_i32 : i32, i32
  }
}

</mosaic_0001>

<llo_original>
// kernel: positionwise_feed_forward.1
$region0: #{positionwise_feed_forward.1}
  #allocation0 [shape = 'u32[]', space=smem, size = 0x4, offset = 0x4, fixed_abs, tag = 'smem constant byte address 0x4 - core index']
  #allocation1 [shape = 'u32[144,128]{1,0:T(1,128)}', space=vmem, size = 0x12000, scoped, tag = 'internal scratch']
  %s0 = inlined_call_operand.vmem [shape: f32[16,128], index: 0, kind: input, shape index: {}]
  %s1 = inlined_call_operand.vmem [shape: bf16[128,64], index: 1, kind: input, shape index: {}]
  %s2 = inlined_call_operand.vmem [shape: f32[1,64], index: 2, kind: input, shape index: {}]
  %s3 = inlined_call_operand.vmem [shape: bf16[64,128], index: 3, kind: input, shape index: {}]
  %s4 = inlined_call_operand.vmem [shape: f32[1,128], index: 4, kind: input, shape index: {}]
  %s5 = inlined_call_operand.vmem [shape: f32[1,128], index: 5, kind: input, shape index: {}]
  %s6 = inlined_call_operand.vmem [shape: f32[1,128], index: 6, kind: input, shape index: {}]
  %s7 = inlined_call_operand.vmem [shape: f32[16,128], index: 7, kind: output, shape index: {}]
  %s8 = sld [smem:[#allocation0]]
  $region61: #{positionwise_feed_forward.1} parent=0
    _
  %s10 = ssub.s32 1, %s8
  %s11 = scalar_select 0, %s10, %s8
  loop: start=0, step=1, limit=4
  $region2: #{positionwise_feed_forward.1} parent=0 // loop_pre_header
    _
  $region3: #{positionwise_feed_forward.1} parent=0 // loop_header
    %s13 = sphi 0, %s17
    %p14 = scmp.ge.s32.totalorder %s13, 4
    %s23 = sphi 0, %s25
    %s26 = sphi 0, %s23
    %s27 = sphi 0, %s26
    %s43 = sphi 0, %s27
    %s47 = sphi 0, %s47
    %s49 = sphi 0, %s47
    %s50 = sphi 0, %s49
    %s64 = sphi 0, %s50
    %s68 = sphi 0, %s68
    %s70 = sphi 0, %s68
    %s71 = sphi 0, %s70
    %s85 = sphi 0, %s71
    %s89 = sphi 0, %s89
    %s91 = sphi 0, %s89
    %s92 = sphi 0, %s91
    %s106 = sphi 0, %s92
    %s110 = sphi 0, %s110
    %s112 = sphi 0, %s110
    %s113 = sphi 0, %s112
    %s127 = sphi 0, %s113
    %s131 = sphi 0, %s131
    %s133 = sphi 0, %s131
    %s134 = sphi 0, %s133
    %s148 = sphi 0, %s134
    %s152 = sphi 0, %s152
    %s154 = sphi 0, %s152
    %s155 = sphi 0, %s154
    %s169 = sphi 0, %s155
    %s175 = sphi 0, %s177
    %s178 = sphi 0, %s175
    %s179 = sphi 0, %s178
    %s195 = sphi 0, %s179
  $region4: #{positionwise_feed_forward.1} parent=0 // loop_header_branch
    %16 = sbr.rel (%p14) target = $region8
  $region5: #{positionwise_feed_forward.1} parent=0 // loop_body
    %s18 = ssub.s32 %s13, 1
    %s19 = ssub.s32 %s13, 2
    %s20 = sadd.s32 %s13, 1
    %s21 = ssub.s32 %s13, %s20
    %p22 = scmp.eq.s32.totalorder %s21, 0
    %s24 = sadd.s32 %s23, 1
    %s25 = scalar_select %p22, %s23, %s24
    %p28 = pneg %p22
    %p29 = scmp.eq.s32.totalorder %s13, 1
    %p30 = por %p28, %p29
    %p31 = scmp.ne.s32.totalorder %s23, %s26
    %p32 = scmp.eq.s32.totalorder %s13, 0
    %p33 = por %p31, %p32
    %p34 = scmp.ne.s32.totalorder %s23, %s26
    %p35 = scmp.eq.s32.totalorder %s18, 1
    %p36 = por %p34, %p35
    %p37 = scmp.ne.s32.totalorder %s26, %s27
    %p38 = scmp.eq.s32.totalorder %s18, 0
    %p39 = por %p37, %p38
    %p40 = scmp.ne.s32.totalorder %s26, %s27
    %p41 = scmp.eq.s32.totalorder %s19, 1
    %p42 = por %p40, %p41
    %p44 = scmp.ne.s32.totalorder %s27, %s43
    %p45 = scmp.eq.s32.totalorder %s19, 0
    %p46 = por %p44, %p45
    %s48 = sadd.s32 %s47, 1
    %p51 = scmp.eq.s32.totalorder %s13, 1
    %p52 = scmp.ne.s32.totalorder %s47, %s49
    %p53 = scmp.eq.s32.totalorder %s13, 0
    %p54 = por %p52, %p53
    %p55 = scmp.ne.s32.totalorder %s47, %s49
    %p56 = scmp.eq.s32.totalorder %s18, 1
    %p57 = por %p55, %p56
    %p58 = scmp.ne.s32.totalorder %s49, %s50
    %p59 = scmp.eq.s32.totalorder %s18, 0
    %p60 = por %p58, %p59
    %p61 = scmp.ne.s32.totalorder %s49, %s50
    %p62 = scmp.eq.s32.totalorder %s19, 1
    %p63 = por %p61, %p62
    %p65 = scmp.ne.s32.totalorder %s50, %s64
    %p66 = scmp.eq.s32.totalorder %s19, 0
    %p67 = por %p65, %p66
    %s69 = sadd.s32 %s68, 1
    %p72 = scmp.eq.s32.totalorder %s13, 1
    %p73 = scmp.ne.s32.totalorder %s68, %s70
    %p74 = scmp.eq.s32.totalorder %s13, 0
    %p75 = por %p73, %p74
    %p76 = scmp.ne.s32.totalorder %s68, %s70
    %p77 = scmp.eq.s32.totalorder %s18, 1
    %p78 = por %p76, %p77
    %p79 = scmp.ne.s32.totalorder %s70, %s71
    %p80 = scmp.eq.s32.totalorder %s18, 0
    %p81 = por %p79, %p80
    %p82 = scmp.ne.s32.totalorder %s70, %s71
    %p83 = scmp.eq.s32.totalorder %s19, 1
    %p84 = por %p82, %p83
    %p86 = scmp.ne.s32.totalorder %s71, %s85
    %p87 = scmp.eq.s32.totalorder %s19, 0
    %p88 = por %p86, %p87
    %s90 = sadd.s32 %s89, 1
    %p93 = scmp.eq.s32.totalorder %s13, 1
    %p94 = scmp.ne.s32.totalorder %s89, %s91
    %p95 = scmp.eq.s32.totalorder %s13, 0
    %p96 = por %p94, %p95
    %p97 = scmp.ne.s32.totalorder %s89, %s91
    %p98 = scmp.eq.s32.totalorder %s18, 1
    %p99 = por %p97, %p98
    %p100 = scmp.ne.s32.totalorder %s91, %s92
    %p101 = scmp.eq.s32.totalorder %s18, 0
    %p102 = por %p100, %p101
    %p103 = scmp.ne.s32.totalorder %s91, %s92
    %p104 = scmp.eq.s32.totalorder %s19, 1
    %p105 = por %p103, %p104
    %p107 = scmp.ne.s32.totalorder %s92, %s106
    %p108 = scmp.eq.s32.totalorder %s19, 0
    %p109 = por %p107, %p108
    %s111 = sadd.s32 %s110, 1
    %p114 = scmp.eq.s32.totalorder %s13, 1
    %p115 = scmp.ne.s32.totalorder %s110, %s112
    %p116 = scmp.eq.s32.totalorder %s13, 0
    %p117 = por %p115, %p116
    %p118 = scmp.ne.s32.totalorder %s110, %s112
    %p119 = scmp.eq.s32.totalorder %s18, 1
    %p120 = por %p118, %p119
    %p121 = scmp.ne.s32.totalorder %s112, %s113
    %p122 = scmp.eq.s32.totalorder %s18, 0
    %p123 = por %p121, %p122
    %p124 = scmp.ne.s32.totalorder %s112, %s113
    %p125 = scmp.eq.s32.totalorder %s19, 1
    %p126 = por %p124, %p125
    %p128 = scmp.ne.s32.totalorder %s113, %s127
    %p129 = scmp.eq.s32.totalorder %s19, 0
    %p130 = por %p128, %p129
    %s132 = sadd.s32 %s131, 1
    %p135 = scmp.eq.s32.totalorder %s13, 1
    %p136 = scmp.ne.s32.totalorder %s131, %s133
    %p137 = scmp.eq.s32.totalorder %s13, 0
    %p138 = por %p136, %p137
    %p139 = scmp.ne.s32.totalorder %s131, %s133
    %p140 = scmp.eq.s32.totalorder %s18, 1
    %p141 = por %p139, %p140
    %p142 = scmp.ne.s32.totalorder %s133, %s134
    %p143 = scmp.eq.s32.totalorder %s18, 0
    %p144 = por %p142, %p143
    %p145 = scmp.ne.s32.totalorder %s133, %s134
    %p146 = scmp.eq.s32.totalorder %s19, 1
    %p147 = por %p145, %p146
    %p149 = scmp.ne.s32.totalorder %s134, %s148
    %p150 = scmp.eq.s32.totalorder %s19, 0
    %p151 = por %p149, %p150
    %s153 = sadd.s32 %s152, 1
    %p156 = scmp.eq.s32.totalorder %s13, 1
    %p157 = scmp.ne.s32.totalorder %s152, %s154
    %p158 = scmp.eq.s32.totalorder %s13, 0
    %p159 = por %p157, %p158
    %p160 = scmp.ne.s32.totalorder %s152, %s154
    %p161 = scmp.eq.s32.totalorder %s18, 1
    %p162 = por %p160, %p161
    %p163 = scmp.ne.s32.totalorder %s154, %s155
    %p164 = scmp.eq.s32.totalorder %s18, 0
    %p165 = por %p163, %p164
    %p166 = scmp.ne.s32.totalorder %s154, %s155
    %p167 = scmp.eq.s32.totalorder %s19, 1
    %p168 = por %p166, %p167
    %p170 = scmp.ne.s32.totalorder %s155, %s169
    %p171 = scmp.eq.s32.totalorder %s19, 0
    %p172 = por %p170, %p171
    %s173 = ssub.s32 %s13, %s20
    %p174 = scmp.eq.s32.totalorder %s173, 0
    %s176 = sadd.s32 %s175, 1
    %s177 = scalar_select %p174, %s175, %s176
    %p180 = pneg %p174
    %p181 = scmp.eq.s32.totalorder %s13, 1
    %p182 = por %p180, %p181
    %p183 = scmp.ne.s32.totalorder %s175, %s178
    %p184 = scmp.eq.s32.totalorder %s13, 0
    %p185 = por %p183, %p184
    %p186 = scmp.ne.s32.totalorder %s175, %s178
    %p187 = scmp.eq.s32.totalorder %s18, 1
    %p188 = por %p186, %p187
    %p189 = scmp.ne.s32.totalorder %s178, %s179
    %p190 = scmp.eq.s32.totalorder %s18, 0
    %p191 = por %p189, %p190
    %p192 = scmp.ne.s32.totalorder %s178, %s179
    %p193 = scmp.eq.s32.totalorder %s19, 1
    %p194 = por %p192, %p193
    %p196 = scmp.ne.s32.totalorder %s179, %s195
    %p197 = scmp.eq.s32.totalorder %s19, 0
    %p198 = por %p196, %p197
    %p199 = scmp.le.s32.totalorder 1, %s13
    %p200 = scmp.lt.s32.totalorder %s13, 3
    %p201 = pnand %p199, %p200
    %p202 = pneg %p201
    // Predicated region
    $region9: #{positionwise_feed_forward.1} parent=5 // pred_check
      _
    $region10: #{positionwise_feed_forward.1} parent=5 // pred_check_branch
      %204 = sbr.rel (%p201) target = $region12
    $region11: #{positionwise_feed_forward.1} parent=5 // pred_region
      %s205 = ssub.s32 %s13, 1
      // Predicated region
      $region13: #{positionwise_feed_forward.1} parent=11 // pred_check
        %p206 = pneg %p60
      $region14: #{positionwise_feed_forward.1} parent=11 // pred_check_branch
        %208 = sbr.rel (%p206) target = $region16
      $region15: #{positionwise_feed_forward.1} parent=11 // pred_region
        _
      $region16: #{positionwise_feed_forward.1} parent=11 // pred_fallthru
        _
      // Predicated region
      $region17: #{positionwise_feed_forward.1} parent=11 // pred_check
        %p209 = pneg %p81
      $region18: #{positionwise_feed_forward.1} parent=11 // pred_check_branch
        %211 = sbr.rel (%p209) target = $region20
      $region19: #{positionwise_feed_forward.1} parent=11 // pred_region
        _
      $region20: #{positionwise_feed_forward.1} parent=11 // pred_fallthru
        _
      // Predicated region
      $region21: #{positionwise_feed_forward.1} parent=11 // pred_check
        %p212 = pneg %p102
      $region22: #{positionwise_feed_forward.1} parent=11 // pred_check_branch
        %214 = sbr.rel (%p212) target = $region24
      $region23: #{positionwise_feed_forward.1} parent=11 // pred_region
        _
      $region24: #{positionwise_feed_forward.1} parent=11 // pred_fallthru
        _
      // Predicated region
      $region25: #{positionwise_feed_forward.1} parent=11 // pred_check
        %p215 = pneg %p123
      $region26: #{positionwise_feed_forward.1} parent=11 // pred_check_branch
        %217 = sbr.rel (%p215) target = $region28
      $region27: #{positionwise_feed_forward.1} parent=11 // pred_region
        _
      $region28: #{positionwise_feed_forward.1} parent=11 // pred_fallthru
        _
      // Predicated region
      $region29: #{positionwise_feed_forward.1} parent=11 // pred_check
        %p218 = pneg %p144
      $region30: #{positionwise_feed_forward.1} parent=11 // pred_check_branch
        %220 = sbr.rel (%p218) target = $region32
      $region31: #{positionwise_feed_forward.1} parent=11 // pred_region
        _
      $region32: #{positionwise_feed_forward.1} parent=11 // pred_fallthru
        _
      // Predicated region
      $region33: #{positionwise_feed_forward.1} parent=11 // pred_check
        %p221 = pneg %p165
      $region34: #{positionwise_feed_forward.1} parent=11 // pred_check_branch
        %223 = sbr.rel (%p221) target = $region36
      $region35: #{positionwise_feed_forward.1} parent=11 // pred_region
        _
      $region36: #{positionwise_feed_forward.1} parent=11 // pred_fallthru
        _
    $region12: #{positionwise_feed_forward.1} parent=5 // pred_fallthru
      _
    %p224 = scmp.lt.s32.totalorder %s13, 2
    // Predicated region
    $region37: #{positionwise_feed_forward.1} parent=5 // pred_check
      %p225 = pneg %p224
    $region38: #{positionwise_feed_forward.1} parent=5 // pred_check_branch
      %227 = sbr.rel (%p225) target = $region40
    $region39: #{positionwise_feed_forward.1} parent=5 // pred_region
      // Predicated region
      $region41: #{positionwise_feed_forward.1} parent=39 // pred_check
        %p228 = pneg %p33
      $region42: #{positionwise_feed_forward.1} parent=39 // pred_check_branch
        %230 = sbr.rel (%p228) target = $region44
      $region43: #{positionwise_feed_forward.1} parent=39 // pred_region
        %p231 = scmp.lt.s32.totalorder %s13, 1
        %s232 = scalar_select %p231, %s13, 1
        %s233 = smul.addr %s232, 8
        %s234 = scalar_lea.vmem %s0, %s233
      $region44: #{positionwise_feed_forward.1} parent=39 // pred_fallthru
        _
    $region40: #{positionwise_feed_forward.1} parent=5 // pred_fallthru
      _
    %p235 = scmp.le.s32.totalorder 1, %s13
    %p236 = scmp.lt.s32.totalorder %s13, 3
    %p237 = pnand %p235, %p236
    %p238 = pneg %p237
    // Predicated region
    $region45: #{positionwise_feed_forward.1} parent=5 // pred_check
      _
    $region46: #{positionwise_feed_forward.1} parent=5 // pred_check_branch
      %240 = sbr.rel (%p237) target = $region48
    $region47: #{positionwise_feed_forward.1} parent=5 // pred_region
      %s241 = ssub.s32 %s13, 1
      %p242 = scmp.lt.s32.totalorder %s18, 1
      %s243 = scalar_select %p242, %s18, 1
      %s244 = smul.addr %s243, 8
      %s245 = scalar_lea.vmem %s0, %s244
      %p246 = pneg %p39
      %p247 = pneg %p36
      %p248 = pneg %p60
      %p249 = pneg %p57
      %p250 = pneg %p81
      %p251 = pneg %p78
      %p252 = pneg %p102
      %p253 = pneg %p99
      %p254 = pneg %p123
      %p255 = pneg %p120
      %p256 = pneg %p144
      %p257 = pneg %p141
      %p258 = pneg %p165
      %p259 = pneg %p162
      %p260 = pneg %p191
      %p261 = pneg %p188
      %p262 = scmp.lt.s32.totalorder %s18, 1
      %s263 = scalar_select %p262, %s18, 1
      %s264 = smul.addr %s263, 8
      %s265 = scalar_lea.vmem %s7, %s264
      %p266 = scmp.lt.s32.totalorder %s18, 1
      %s267 = scalar_select %p266, %s18, 1
      %s268 = smul.addr %s267, 8
      %s269 = scalar_lea.vmem %s0, %s268
      %p270 = scmp.lt.s32.totalorder %s18, 1
      %s271 = scalar_select %p270, %s18, 1
      %s272 = smul.addr %s271, 8
      %s273 = scalar_lea.vmem %s7, %s272
      %v275 = vld [vmem:[%s269] sm:$0xff]
      %v276 = vpack.c.bf16 %v275, %v275
      %v277 = vld [vmem:[%s1] sm:$0xf]
      %v278 = vld [vmem:[%s1 + $0x4] sm:$0xf]
      %v279 = vld [vmem:[%s1 + $0x8] sm:$0xf]
      %v280 = vld [vmem:[%s1 + $0xc] sm:$0xf]
      %v281 = vld [vmem:[%s1 + $0x10] sm:$0xf]
      %v282 = vld [vmem:[%s1 + $0x14] sm:$0xf]
      %v283 = vld [vmem:[%s1 + $0x18] sm:$0xf]
      %v284 = vld [vmem:[%s1 + $0x1c] sm:$0xf]
      %v285 = vld [vmem:[%s1 + $0x20] sm:$0xf]
      %v286 = vld [vmem:[%s1 + $0x24] sm:$0xf]
      %v287 = vld [vmem:[%s1 + $0x28] sm:$0xf]
      %v288 = vld [vmem:[%s1 + $0x2c] sm:$0xf]
      %v289 = vld [vmem:[%s1 + $0x30] sm:$0xf]
      %v290 = vld [vmem:[%s1 + $0x34] sm:$0xf]
      %v291 = vld [vmem:[%s1 + $0x38] sm:$0xf]
      %v292 = vld [vmem:[%s1 + $0x3c] sm:$0xf]
      %v293 = vld [vmem:[%s2] sm:$0x1]
      %v295 = vlaneseq
      %v296 = vshrl.u32 %v295, 7
      %v297 = vsub.s32 0, %v296
      %v298 = vrot.slane %v293, %v297
      %v316 = vunpack.c.l.b16 %v277
      %v317 = vunpack.c.l.b16 %v278
      %v318 = vunpack.c.l.b16 %v279
      %v319 = vunpack.c.l.b16 %v280
      %v320 = vunpack.c.l.b16 %v281
      %v321 = vunpack.c.l.b16 %v282
      %v322 = vunpack.c.l.b16 %v283
      %v323 = vunpack.c.l.b16 %v284
      %v324 = vunpack.c.l.b16 %v285
      %v325 = vunpack.c.l.b16 %v286
      %v326 = vunpack.c.l.b16 %v287
      %v327 = vunpack.c.l.b16 %v288
      %v328 = vunpack.c.l.b16 %v289
      %v329 = vunpack.c.l.b16 %v290
      %v330 = vunpack.c.l.b16 %v291
      %v331 = vunpack.c.l.b16 %v292
      %v332 = vpack.c.b16 %v317, %v316
      %v333 = vpack.c.b16 %v319, %v318
      %v334 = vpack.c.b16 %v321, %v320
      %v335 = vpack.c.b16 %v323, %v322
      %v336 = vpack.c.b16 %v325, %v324
      %v337 = vpack.c.b16 %v327, %v326
      %v338 = vpack.c.b16 %v329, %v328
      %v339 = vpack.c.b16 %v331, %v330
      %348 = vmatprep.subr.bf16.mxu0 0
      %349 = vmatpush1.bf16.msra.mxu0 %v332
      %350 = vmatprep.subr.bf16.mxu0 0
      %351 = vmatpush1.bf16.msra.mxu0 %v333
      %352 = vmatprep.subr.bf16.mxu0 0
      %353 = vmatpush1.bf16.msra.mxu0 %v334
      %354 = vmatprep.subr.bf16.mxu0 0
      %355 = vmatpush1.bf16.msra.mxu0 %v335
      %356 = vmatprep.subr.bf16.mxu0 0
      %357 = vmatpush1.bf16.msra.mxu0 %v336
      %358 = vmatprep.subr.bf16.mxu0 0
      %359 = vmatpush1.bf16.msra.mxu0 %v337
      %360 = vmatprep.subr.bf16.mxu0 0
      %361 = vmatpush1.bf16.msra.mxu0 %v338
      %362 = vmatprep.subr.bf16.mxu0 0
      %363 = vmatpush1.bf16.msra.mxu0 %v339
      %364 = vmatprep.subr.bf16.mxu0 0
      %365 = vmatpush1.bf16.msra.mxu0 0
      %366 = vmatprep.subr.bf16.mxu0 0
      %367 = vmatpush1.bf16.msra.mxu0 0
      %368 = vmatprep.subr.bf16.mxu0 0
      %369 = vmatpush1.bf16.msra.mxu0 0
      %370 = vmatprep.subr.bf16.mxu0 0
      %371 = vmatpush1.bf16.msra.mxu0 0
      %372 = vmatprep.subr.bf16.mxu0 0
      %373 = vmatpush1.bf16.msra.mxu0 0
      %374 = vmatprep.subr.bf16.mxu0 0
      %375 = vmatpush1.bf16.msra.mxu0 0
      %376 = vmatprep.subr.bf16.mxu0 0
      %377 = vmatpush1.bf16.msra.mxu0 0
      %378 = vmatprep.subr.bf16.mxu0 0
      %379 = vmatpush1.bf16.msra.mxu0 0
      %380 = vmatprep.mubr.bf16.mxu0 0
      %381 = vmatmul.mubr.bf16.gmra.mrb[0].mxu0 %v276
      %v382 = vpop.f32.mrb[0].mxu0
      %v383 = vadd.f32 %v298, %v382
      %v384 = vpop.f32.mrb[0].mxu0
      %v385 = vpop.f32.mrb[0].mxu0
      %v386 = vpop.f32.mrb[0].mxu0
      %387 = vdwg.mxu0
      %v388 = vmax.f32 %v383, 0.0
      %v389 = vpack.c.bf16 %v388, %v388
      %v390 = vld [vmem:[%s3] sm:$0xf]
      %v391 = vld [vmem:[%s3 + $0x4] sm:$0xf]
      %v392 = vld [vmem:[%s3 + $0x8] sm:$0xf]
      %v393 = vld [vmem:[%s3 + $0xc] sm:$0xf]
      %v394 = vld [vmem:[%s3 + $0x10] sm:$0xf]
      %v395 = vld [vmem:[%s3 + $0x14] sm:$0xf]
      %v396 = vld [vmem:[%s3 + $0x18] sm:$0xf]
      %v397 = vld [vmem:[%s3 + $0x1c] sm:$0xf]
      %v398 = vld [vmem:[%s4] sm:$0x1]
      %v400 = vlaneseq
      %v401 = vshrl.u32 %v400, 7
      %v402 = vsub.s32 0, %v401
      %v403 = vrot.slane %v398, %v402
      %v413 = vunpack.c.l.b16 %v390
      %v414 = vunpack.c.l.b16 %v391
      %v415 = vunpack.c.l.b16 %v392
      %v416 = vunpack.c.l.b16 %v393
      %v417 = vunpack.c.l.b16 %v394
      %v418 = vunpack.c.l.b16 %v395
      %v419 = vunpack.c.l.b16 %v396
      %v420 = vunpack.c.l.b16 %v397
      %v421 = vpack.c.b16 %v414, %v413
      %v422 = vpack.c.b16 %v416, %v415
      %v423 = vpack.c.b16 %v418, %v417
      %v424 = vpack.c.b16 %v420, %v419
      %vm429 = vcmask 523264
      %v431 = vsel %vm429, %v389, 0
      %433 = vmatprep.subr.bf16.mxu0 0
      %434 = vmatpush1.bf16.msra.mxu0 %v421
      %435 = vmatprep.subr.bf16.mxu0 0
      %436 = vmatpush1.bf16.msra.mxu0 %v422
      %437 = vmatprep.subr.bf16.mxu0 0
      %438 = vmatpush1.bf16.msra.mxu0 %v423
      %439 = vmatprep.subr.bf16.mxu0 0
      %440 = vmatpush1.bf16.msra.mxu0 %v424
      %441 = vmatprep.subr.bf16.mxu0 0
      %442 = vmatpush1.bf16.msra.mxu0 0
      %443 = vmatprep.subr.bf16.mxu0 0
      %444 = vmatpush1.bf16.msra.mxu0 0
      %445 = vmatprep.subr.bf16.mxu0 0
      %446 = vmatpush1.bf16.msra.mxu0 0
      %447 = vmatprep.subr.bf16.mxu0 0
      %448 = vmatpush1.bf16.msra.mxu0 0
      %449 = vmatprep.subr.bf16.mxu0 0
      %450 = vmatpush1.bf16.msra.mxu0 0
      %451 = vmatprep.subr.bf16.mxu0 0
      %452 = vmatpush1.bf16.msra.mxu0 0
      %453 = vmatprep.subr.bf16.mxu0 0
      %454 = vmatpush1.bf16.msra.mxu0 0
      %455 = vmatprep.subr.bf16.mxu0 0
      %456 = vmatpush1.bf16.msra.mxu0 0
      %457 = vmatprep.subr.bf16.mxu0 0
      %458 = vmatpush1.bf16.msra.mxu0 0
      %459 = vmatprep.subr.bf16.mxu0 0
      %460 = vmatpush1.bf16.msra.mxu0 0
      %461 = vmatprep.subr.bf16.mxu0 0
      %462 = vmatpush1.bf16.msra.mxu0 0
      %463 = vmatprep.subr.bf16.mxu0 0
      %464 = vmatpush1.bf16.msra.mxu0 0
      %465 = vmatprep.mubr.bf16.mxu0 0
      %466 = vmatmul.mubr.bf16.gmra.mrb[0].mxu0 %v431
      %v467 = vpop.f32.mrb[0].mxu0
      %v468 = vadd.f32 %v403, %v467
      %v469 = vpop.f32.mrb[0].mxu0
      %v470 = vpop.f32.mrb[0].mxu0
      %v471 = vpop.f32.mrb[0].mxu0
      %472 = vdwg.mxu0
      %v473 = vadd.f32 %v468, %v275
      %474 = vadd.xlane.f32.xlu0 %v473
      %v475 = vpop.xlane.xlu0 %474
      %v476 = vmul.f32 %v475, 0.03125
      %v477 = vsub.f32 %v473, %v476
      %v478 = vlaneseq
      %v479 = vand.u32 %v478, 127
      %vm480 = vcmp.lt.s32.totalorder %v479, 32
      %v481 = vsel %vm480, %v477, 0.0
      %v482 = vmul.f32 %v481, %v481
      %483 = vadd.xlane.f32.xlu0 %v482
      %v484 = vpop.xlane.xlu0 %483
      %v485 = vmul.f32 %v484, 0.032258064
      %v486 = vrsqrt.pop %v485
      %v487 = vmul.f32 %v485, %v486
      %vm488 = vcmp.eq.f32.partialorder %v485, inf
      %v489 = vsel %vm488, %v485, %v487
      %vm490 = vcmp.eq.f32.partialorder %v485, 0.0
      %v491 = vand.u32 %v485, 2147483648
      %v492 = vsel %vm490, %v491, %v489
      %v493 = vadd.f32 %v492, 0.001
      %v494 = vrcp.pop %v493
      %v495 = vmul.f32 %v481, %v494
      %v496 = vld [vmem:[%s5] sm:$0x1]
      %v498 = vlaneseq
      %v499 = vshrl.u32 %v498, 7
      %v500 = vsub.s32 0, %v499
      %v501 = vrot.slane %v496, %v500
      %v503 = vmul.f32 %v495, %v501
      %v504 = vld [vmem:[%s6] sm:$0x1]
      %v506 = vlaneseq
      %v507 = vshrl.u32 %v506, 7
      %v508 = vsub.s32 0, %v507
      %v509 = vrot.slane %v504, %v508
      %v511 = vadd.f32 %v503, %v509
      %512 = vst [vmem:[%s273] sm:$0xff] %v511
      %p513 = scmp.lt.s32.totalorder %s18, 1
      %s514 = scalar_select %p513, %s18, 1
      %s515 = smul.addr %s514, 8
      %s516 = scalar_lea.vmem %s7, %s515
      // Predicated region
      $region49: #{positionwise_feed_forward.1} parent=47 // pred_check
        %p517 = pneg %p188
      $region50: #{positionwise_feed_forward.1} parent=47 // pred_check_branch
        %519 = sbr.rel (%p517) target = $region52
      $region51: #{positionwise_feed_forward.1} parent=47 // pred_region
        _
      $region52: #{positionwise_feed_forward.1} parent=47 // pred_fallthru
        _
    $region48: #{positionwise_feed_forward.1} parent=5 // pred_fallthru
      _
    %p520 = scmp.le.s32.totalorder 2, %s13
    // Predicated region
    $region53: #{positionwise_feed_forward.1} parent=5 // pred_check
      %p521 = pneg %p520
    $region54: #{positionwise_feed_forward.1} parent=5 // pred_check_branch
      %523 = sbr.rel (%p521) target = $region56
    $region55: #{positionwise_feed_forward.1} parent=5 // pred_region
      %s524 = ssub.s32 %s13, 2
      // Predicated region
      $region57: #{positionwise_feed_forward.1} parent=55 // pred_check
        %p525 = pneg %p194
      $region58: #{positionwise_feed_forward.1} parent=55 // pred_check_branch
        %527 = sbr.rel (%p525) target = $region60
      $region59: #{positionwise_feed_forward.1} parent=55 // pred_region
        %p528 = scmp.lt.s32.totalorder %s19, 1
        %s529 = scalar_select %p528, %s19, 1
        %s530 = smul.addr %s529, 8
        %s531 = scalar_lea.vmem %s7, %s530
      $region60: #{positionwise_feed_forward.1} parent=55 // pred_fallthru
        _
    $region56: #{positionwise_feed_forward.1} parent=5 // pred_fallthru
      _
  $region6: #{positionwise_feed_forward.1} parent=0 // loop_footer
    %s17 = sadd.s32 1, %s13
  $region7: #{positionwise_feed_forward.1} parent=0 // loop_footer_branch
    %12 = sbr.rel target = $region3
  $region8: #{positionwise_feed_forward.1} parent=0 // loop_exit
    _

</llo_original>
